<compile_context>
chip_gen: v7x
topology: tpu7x:2x2x1
jax: 0.10.0
libtpu: 0.0.40
codegen_flags: <defaults>
</compile_context>

<pallas_src>
import functools
import math

import jax
import jax.numpy as jnp
from jax.experimental import pallas as pl
from jax.experimental.pallas import tpu as pltpu

_MIB = 1024 * 1024


def _round_up(x: int, m: int) -> int:
    return (x + m - 1) // m * m


def _device_defaults():
    """(default row tile, resident-mode VMEM budget, scoped VMEM cap)."""
    try:
        kind = jax.devices()[0].device_kind.lower()
    except Exception:
        kind = ""
    if "v5" in kind or "v6" in kind:
        # 128 MiB physical VMEM, lower HBM BW -> big tiles, generous limit.
        return 512, 96 * _MIB, 100 * _MIB
    # v7x (64 MiB physical VMEM) or unknown: conservative.
    return 256, 40 * _MIB, 56 * _MIB


def _sage_agg_resident_kernel(a_ref, p_ref, s_ref, dinv_ref, o_ref, *, apply_relu):
    # a_ref:    (tm, Np) int8 binary adjacency rows (A[i, j] = 1 iff edge j->i)
    # p_ref:    (Np, Fp) bf16 grid-resident P = H @ W_neigh (zero-padded)
    # s_ref:    (tm, Fp) f32  S = H @ W_self + bias (this node tile)
    # dinv_ref: (tm, 1)  f32  1 / max(in_degree, 1)
    a = a_ref[...].astype(jnp.bfloat16)              # 0/1: exact; VPU upcast
    neigh = jnp.dot(a, p_ref[...], preferred_element_type=jnp.float32)
    out = neigh * dinv_ref[...] + s_ref[...]
    if apply_relu:
        out = jnp.maximum(out, 0.0)
    o_ref[...] = out.astype(o_ref.dtype)


def _sage_agg_ktiled_kernel(a_ref, p_ref, s_ref, dinv_ref, o_ref, acc_ref, *,
                            apply_relu):
    # Same math, with a K grid axis over neighbors and an f32 accumulator.
    k = pl.program_id(1)

    @pl.when(k == 0)
    def _():
        acc_ref[...] = jnp.zeros_like(acc_ref)

    a = a_ref[...].astype(jnp.bfloat16)
    acc_ref[...] += jnp.dot(a, p_ref[...], preferred_element_type=jnp.float32)

    @pl.when(k == pl.num_programs(1) - 1)
    def _():
        out = acc_ref[...] * dinv_ref[...] + s_ref[...]
        if apply_relu:
            out = jnp.maximum(out, 0.0)
        o_ref[...] = out.astype(o_ref.dtype)


def sage_conv(adj_pad, dinv_pad, h, w_self, w_neigh, bias, *,
              apply_relu, tm, tk, mode, vmem_cap):
    """One SAGEConv('mean') layer.

    adj_pad:  (Np, Np) int8 binary adjacency, zero-padded.
    dinv_pad: (Np, 1)  f32 1/max(in_deg, 1), zero-padded.
    h:        (N, F_in) node features (unpadded, f32 or bf16).
    """
    n = h.shape[0]
    n_pad = adj_pad.shape[0]
    f_out = w_self.shape[1]
    f_pad = _round_up(f_out, 128)                    # lane-dense output

    # Reassociated prologue: tiny O(N * F_in * F_out) matmuls stay in plain XLA.
    hf = h.astype(jnp.float32)
    p = (hf @ w_neigh).astype(jnp.bfloat16)          # bf16 -> native MXU path
    s = (hf @ w_self + bias).astype(jnp.float32)
    p = jnp.pad(p, ((0, n_pad - n), (0, f_pad - f_out)))
    s = jnp.pad(s, ((0, n_pad - n), (0, f_pad - f_out)))

    out_dtype = jnp.bfloat16 if apply_relu else jnp.float32  # layer-1 out in bf16
    out_bytes = jnp.dtype(out_dtype).itemsize

    if mode == "resident":
        grid = (n_pad // tm,)
        in_specs = [
            pl.BlockSpec((tm, n_pad), lambda i: (i, 0)),           # A rows (streamed)
            pl.BlockSpec((n_pad, f_pad), lambda i: (0, 0),
                         pipeline_mode=pl.Buffered(1)),            # P resident, 1 buffer
            pl.BlockSpec((tm, f_pad), lambda i: (i, 0)),           # S tile
            pl.BlockSpec((tm, 1), lambda i: (i, 0)),               # 1/deg tile
        ]
        out_specs = pl.BlockSpec((tm, f_pad), lambda i: (i, 0))
        scratch_shapes = []
        dim_sem = ("parallel",)
        kernel = functools.partial(_sage_agg_resident_kernel, apply_relu=apply_relu)
        est = (2 * tm * n_pad                  # A int8, double-buffered
               + n_pad * f_pad * 2             # P bf16, single buffer
               + 2 * tm * f_pad * 4            # S
               + 2 * tm * 128 * 4              # 1/deg (lane-padded)
               + 2 * tm * f_pad * out_bytes)   # out
    else:  # "ktiled"
        grid = (n_pad // tm, n_pad // tk)
        in_specs = [
            pl.BlockSpec((tm, tk), lambda i, k: (i, k)),
            pl.BlockSpec((tk, f_pad), lambda i, k: (k, 0)),
            pl.BlockSpec((tm, f_pad), lambda i, k: (i, 0)),
            pl.BlockSpec((tm, 1), lambda i, k: (i, 0)),
        ]
        out_specs = pl.BlockSpec((tm, f_pad), lambda i, k: (i, 0))
        scratch_shapes = [pltpu.VMEM((tm, f_pad), jnp.float32)]
        dim_sem = ("parallel", "arbitrary")
        kernel = functools.partial(_sage_agg_ktiled_kernel, apply_relu=apply_relu)
        est = (2 * tm * tk + 2 * tk * f_pad * 2 + 2 * tm * f_pad * 4
               + 2 * tm * 128 * 4 + 2 * tm * f_pad * out_bytes + tm * f_pad * 4)

    vmem_limit = int(min(max(est + 16 * _MIB, 32 * _MIB), vmem_cap))

    out_pad = pl.pallas_call(
        kernel,
        out_shape=jax.ShapeDtypeStruct((n_pad, f_pad), out_dtype),
        grid_spec=pltpu.PrefetchScalarGridSpec(
            num_scalar_prefetch=0,
            grid=grid,
            in_specs=in_specs,
            out_specs=out_specs,
            scratch_shapes=scratch_shapes,
        ),
        compiler_params=pltpu.CompilerParams(
            dimension_semantics=dim_sem,
            vmem_limit_bytes=vmem_limit,
        ),
    )(adj_pad, p, s, dinv_pad)
    return out_pad[:n, :f_out]


def graphsage_forward(adj, x, params, *, tm=None, tk=2048, mode="auto"):
    """adj: (N, N) with adj[i, j] != 0 iff edge j -> i.  x: (N, F_in)."""
    n = adj.shape[0]
    tm_default, resident_budget, vmem_cap = _device_defaults()
    if tm is None:
        tm = tm_default
    tm = max(32, min(tm, _round_up(n, 32)))          # int8 sublane packing: x32

    f_pad = max(_round_up(params["w_self1"].shape[1], 128),
                _round_up(params["w_self2"].shape[1], 128))

    if mode == "auto":
        n_pad_res = _round_up(n, tm)
        est_res = (2 * tm * n_pad_res + n_pad_res * f_pad * 2
                   + 4 * tm * f_pad * 4 + 2 * tm * 128 * 4)
        mode = "resident" if est_res <= resident_budget else "ktiled"

    if mode == "resident":
        n_pad = _round_up(n, tm)
    else:
        tk = max(128, min(tk, _round_up(n, 128)))
        n_pad = _round_up(n, math.lcm(tm, tk))

    # Single logical N^2 pass before the kernels: cast to int8 once (0/1 exact),
    # pad once, and derive in-degrees from the int8 copy (no extra f32 pass).
    adj_pad = jnp.pad((adj != 0).astype(jnp.int8), ((0, n_pad - n), (0, n_pad - n)))
    deg = jnp.sum(adj_pad, axis=1, dtype=jnp.int32).astype(jnp.float32)[:, None]
    dinv_pad = 1.0 / jnp.maximum(deg, 1.0)           # mean; 0-in-degree -> 0 agg

    h = sage_conv(adj_pad, dinv_pad, x, params["w_self1"], params["w_neigh1"],
                  params["b1"], apply_relu=True, tm=tm, tk=tk, mode=mode,
                  vmem_cap=vmem_cap)
    h = sage_conv(adj_pad, dinv_pad, h, params["w_self2"], params["w_neigh2"],
                  params["b2"], apply_relu=False, tm=tm, tk=tk, mode=mode,
                  vmem_cap=vmem_cap)
    return h


def _reference(adj, x, params):
    deg = adj.sum(axis=1, keepdims=True)
    a_norm = adj / jnp.maximum(deg, 1.0)
    h = x @ params["w_self1"] + (a_norm @ x) @ params["w_neigh1"] + params["b1"]
    h = jnp.maximum(h, 0.0)
    return h @ params["w_self2"] + (a_norm @ h) @ params["w_neigh2"] + params["b2"]


if __name__ == "__main__":
    # Small synthetic stand-in for the Cora graph used by the original script.
    N, IN_FEATS, H_FEATS = 128, 64, 32

    key = jax.random.PRNGKey(0)
    k_adj, k_x, k1, k2, k3, k4, k5, k6 = jax.random.split(key, 8)

    # Random directed graph; adj[i, j] = 1 means edge j -> i.
    adj = (jax.random.uniform(k_adj, (N, N)) < 0.05).astype(jnp.float32)
    x = jax.random.normal(k_x, (N, IN_FEATS), dtype=jnp.float32)

    scale1 = 1.0 / float(IN_FEATS) ** 0.5
    scale2 = 1.0 / float(H_FEATS) ** 0.5
    params = {
        "w_self1":  scale1 * jax.random.normal(k1, (IN_FEATS, H_FEATS), jnp.float32),
        "w_neigh1": scale1 * jax.random.normal(k2, (IN_FEATS, H_FEATS), jnp.float32),
        "b1":       0.1 * jax.random.normal(k5, (H_FEATS,), jnp.float32),
        "w_self2":  scale2 * jax.random.normal(k3, (H_FEATS, H_FEATS), jnp.float32),
        "w_neigh2": scale2 * jax.random.normal(k4, (H_FEATS, H_FEATS), jnp.float32),
        "b2":       0.1 * jax.random.normal(k6, (H_FEATS,), jnp.float32),
    }

    ref = _reference(adj, x, params)

    # Default ("auto") path: resident P for this small graph.
    out = jax.block_until_ready(jax.jit(graphsage_forward)(adj, x, params))
    assert out.shape == (N, H_FEATS)
    # bf16 P / bf16 layer-1 activations -> looser tolerance than pure f32.
    assert jnp.allclose(out, ref, atol=5e-2, rtol=5e-2), (
        float(jnp.max(jnp.abs(out - ref))))

    # Also exercise the K-tiled (large-graph / v7x) path on the same inputs.
    out_kt = jax.block_until_ready(
        jax.jit(functools.partial(graphsage_forward, mode="ktiled"))(adj, x, params))
    assert jnp.allclose(out_kt, ref, atol=5e-2, rtol=5e-2), (
        float(jnp.max(jnp.abs(out_kt - ref))))

    print("KERNEL_OK")
</pallas_src>

<mosaic_0001>
module attributes {stable_mosaic.version = 11 : i64} {
  func.func @_sage_agg_resident_kernel(%arg0: i32, %arg1: memref<128x128xi8, #tpu.memory_space<vmem>>, %arg2: memref<128x128xbf16, #tpu.memory_space<vmem>>, %arg3: memref<128x128xf32, #tpu.memory_space<vmem>>, %arg4: memref<128x1xf32, #tpu.memory_space<vmem>>, %arg5: memref<128x128xbf16, #tpu.memory_space<vmem>>) attributes {dimension_semantics = [#tpu.dimension_semantics<parallel>], iteration_bounds = array<i64: 1>, scalar_prefetch = 0 : i64, scratch_operands = 0 : i64, tpu.core_type = #tpu.core_type<tc>, window_params = [{transform_indices = @transform_0, window_bounds = array<i64: 128, 128>}, {pipeline_mode = #tpu.pipeline_mode<synchronous>, transform_indices = @transform_1, window_bounds = array<i64: 128, 128>}, {transform_indices = @transform_2, window_bounds = array<i64: 128, 128>}, {transform_indices = @transform_3, window_bounds = array<i64: 128, 1>}, {transform_indices = @transform_4, window_bounds = array<i64: 128, 128>}]} {
    %c0 = arith.constant 0 : index
    %c0_0 = arith.constant 0 : index
    %0 = vector.load %arg1[%c0, %c0_0] : memref<128x128xi8, #tpu.memory_space<vmem>>, vector<128x128xi8>
    %1 = arith.sitofp %0 : vector<128x128xi8> to vector<128x128xbf16>
    %c0_1 = arith.constant 0 : index
    %c0_2 = arith.constant 0 : index
    %2 = vector.load %arg2[%c0_1, %c0_2] : memref<128x128xbf16, #tpu.memory_space<vmem>>, vector<128x128xbf16>
    %cst = arith.constant dense<0.000000e+00> : vector<128x128xf32>
    %3 = tpu.matmul %1, %2, %cst {dimension_numbers = #tpu.dot_dimension_numbers<[1], [0], [0], [1], [0, 0, 1, 1], [], []>} : vector<128x128xbf16>, vector<128x128xbf16>, vector<128x128xf32> -> vector<128x128xf32>
    %c0_3 = arith.constant 0 : index
    %c0_4 = arith.constant 0 : index
    %4 = vector.load %arg4[%c0_3, %c0_4] : memref<128x1xf32, #tpu.memory_space<vmem>>, vector<128x1xf32>
    %5 = vector.broadcast %4 : vector<128x1xf32> to vector<128x128xf32>
    %6 = arith.mulf %3, %5 : vector<128x128xf32>
    %c0_5 = arith.constant 0 : index
    %c0_6 = arith.constant 0 : index
    %7 = vector.load %arg3[%c0_5, %c0_6] : memref<128x128xf32, #tpu.memory_space<vmem>>, vector<128x128xf32>
    %8 = arith.addf %6, %7 : vector<128x128xf32>
    %cst_7 = arith.constant 0.000000e+00 : f32
    %9 = vector.broadcast %cst_7 : f32 to vector<128x128xf32>
    %10 = arith.maximumf %8, %9 : vector<128x128xf32>
    %11 = arith.truncf %10 : vector<128x128xf32> to vector<128x128xbf16>
    %c0_8 = arith.constant 0 : index
    %c0_9 = arith.constant 0 : index
    %12 = vector.load %arg5[%c0_8, %c0_9] : memref<128x128xbf16, #tpu.memory_space<vmem>>, vector<128x128xbf16>
    tpu.vector_store %arg5[%c0_8, %c0_9], %11 {strides = array<i32>} : memref<128x128xbf16, #tpu.memory_space<vmem>>, vector<128x128xbf16>,
    return
  }
  func.func @transform_0(%arg0: i32) -> (i32, i32) {
    %c0_i32 = arith.constant 0 : i32
    %c0_i32_0 = arith.constant 0 : i32
    return %arg0, %c0_i32 : i32, i32
  }
  func.func @transform_1(%arg0: i32) -> (i32, i32) {
    %c0_i32 = arith.constant 0 : i32
    %c0_i32_0 = arith.constant 0 : i32
    %c0_i32_1 = arith.constant 0 : i32
    return %c0_i32, %c0_i32_0 : i32, i32
  }
  func.func @transform_2(%arg0: i32) -> (i32, i32) {
    %c0_i32 = arith.constant 0 : i32
    %c0_i32_0 = arith.constant 0 : i32
    return %arg0, %c0_i32 : i32, i32
  }
  func.func @transform_3(%arg0: i32) -> (i32, i32) {
    %c0_i32 = arith.constant 0 : i32
    %c0_i32_0 = arith.constant 0 : i32
    return %arg0, %c0_i32 : i32, i32
  }
  func.func @transform_4(%arg0: i32) -> (i32, i32) {
    %c0_i32 = arith.constant 0 : i32
    %c0_i32_0 = arith.constant 0 : i32
    return %arg0, %c0_i32 : i32, i32
  }
}

module attributes {stable_mosaic.version = 11 : i64} {
  func.func @_sage_agg_resident_kernel(%arg0: i32, %arg1: memref<128x128xi8, #tpu.memory_space<vmem>>, %arg2: memref<128x128xbf16, #tpu.memory_space<vmem>>, %arg3: memref<128x128xf32, #tpu.memory_space<vmem>>, %arg4: memref<128x1xf32, #tpu.memory_space<vmem>>, %arg5: memref<128x128xf32, #tpu.memory_space<vmem>>) attributes {dimension_semantics = [#tpu.dimension_semantics<parallel>], iteration_bounds = array<i64: 1>, scalar_prefetch = 0 : i64, scratch_operands = 0 : i64, tpu.core_type = #tpu.core_type<tc>, window_params = [{transform_indices = @transform_0, window_bounds = array<i64: 128, 128>}, {pipeline_mode = #tpu.pipeline_mode<synchronous>, transform_indices = @transform_1, window_bounds = array<i64: 128, 128>}, {transform_indices = @transform_2, window_bounds = array<i64: 128, 128>}, {transform_indices = @transform_3, window_bounds = array<i64: 128, 1>}, {transform_indices = @transform_4, window_bounds = array<i64: 128, 128>}]} {
    %c0 = arith.constant 0 : index
    %c0_0 = arith.constant 0 : index
    %0 = vector.load %arg1[%c0, %c0_0] : memref<128x128xi8, #tpu.memory_space<vmem>>, vector<128x128xi8>
    %1 = arith.sitofp %0 : vector<128x128xi8> to vector<128x128xbf16>
    %c0_1 = arith.constant 0 : index
    %c0_2 = arith.constant 0 : index
    %2 = vector.load %arg2[%c0_1, %c0_2] : memref<128x128xbf16, #tpu.memory_space<vmem>>, vector<128x128xbf16>
    %cst = arith.constant dense<0.000000e+00> : vector<128x128xf32>
    %3 = tpu.matmul %1, %2, %cst {dimension_numbers = #tpu.dot_dimension_numbers<[1], [0], [0], [1], [0, 0, 1, 1], [], []>} : vector<128x128xbf16>, vector<128x128xbf16>, vector<128x128xf32> -> vector<128x128xf32>
    %c0_3 = arith.constant 0 : index
    %c0_4 = arith.constant 0 : index
    %4 = vector.load %arg4[%c0_3, %c0_4] : memref<128x1xf32, #tpu.memory_space<vmem>>, vector<128x1xf32>
    %5 = vector.broadcast %4 : vector<128x1xf32> to vector<128x128xf32>
    %6 = arith.mulf %3, %5 : vector<128x128xf32>
    %c0_5 = arith.constant 0 : index
    %c0_6 = arith.constant 0 : index
    %7 = vector.load %arg3[%c0_5, %c0_6] : memref<128x128xf32, #tpu.memory_space<vmem>>, vector<128x128xf32>
    %8 = arith.addf %6, %7 : vector<128x128xf32>
    %c0_7 = arith.constant 0 : index
    %c0_8 = arith.constant 0 : index
    %9 = vector.load %arg5[%c0_7, %c0_8] : memref<128x128xf32, #tpu.memory_space<vmem>>, vector<128x128xf32>
    tpu.vector_store %arg5[%c0_7, %c0_8], %8 {strides = array<i32>} : memref<128x128xf32, #tpu.memory_space<vmem>>, vector<128x128xf32>,
    return
  }
  func.func @transform_0(%arg0: i32) -> (i32, i32) {
    %c0_i32 = arith.constant 0 : i32
    %c0_i32_0 = arith.constant 0 : i32
    return %arg0, %c0_i32 : i32, i32
  }
  func.func @transform_1(%arg0: i32) -> (i32, i32) {
    %c0_i32 = arith.constant 0 : i32
    %c0_i32_0 = arith.constant 0 : i32
    %c0_i32_1 = arith.constant 0 : i32
    return %c0_i32, %c0_i32_0 : i32, i32
  }
  func.func @transform_2(%arg0: i32) -> (i32, i32) {
    %c0_i32 = arith.constant 0 : i32
    %c0_i32_0 = arith.constant 0 : i32
    return %arg0, %c0_i32 : i32, i32
  }
  func.func @transform_3(%arg0: i32) -> (i32, i32) {
    %c0_i32 = arith.constant 0 : i32
    %c0_i32_0 = arith.constant 0 : i32
    return %arg0, %c0_i32 : i32, i32
  }
  func.func @transform_4(%arg0: i32) -> (i32, i32) {
    %c0_i32 = arith.constant 0 : i32
    %c0_i32_0 = arith.constant 0 : i32
    return %arg0, %c0_i32 : i32, i32
  }
}

</mosaic_0001>

<llo_original>
// kernel: graphsage_forward.2
$region0: #{graphsage_forward.2}
  #allocation0 [shape = 'u32[]', space=smem, size = 0x4, offset = 0x4, fixed_abs, tag = 'smem constant byte address 0x4 - core index']
  #allocation1 [shape = 'u32[144,128]{1,0:T(1,128)}', space=vmem, size = 0x12000, scoped, tag = 'internal scratch']
  %s0 = inlined_call_operand.vmem [shape: s8[128,128], index: 0, kind: input, shape index: {}]
  %s1 = inlined_call_operand.vmem [shape: bf16[128,128], index: 1, kind: input, shape index: {}]
  %s2 = inlined_call_operand.vmem [shape: f32[128,128], index: 2, kind: input, shape index: {}]
  %s3 = inlined_call_operand.vmem [shape: f32[128,1], index: 3, kind: input, shape index: {}]
  %s4 = inlined_call_operand.vmem [shape: bf16[128,128], index: 4, kind: output, shape index: {}]
  %s5 = sld [smem:[#allocation0]]
  $region26: #{graphsage_forward.2} parent=0
    _
  %s7 = ssub.s32 1, %s5
  %s8 = scalar_select 0, %s7, %s5
  // Predicated region
  $region2: #{graphsage_forward.2} parent=0 // pred_check
    _
  $region3: #{graphsage_forward.2} parent=0 // pred_check_branch
    %10 = sbr.rel (0) target = $region5
  $region4: #{graphsage_forward.2} parent=0 // pred_region
    _
  $region5: #{graphsage_forward.2} parent=0 // pred_fallthru
    _
  // Predicated region
  $region6: #{graphsage_forward.2} parent=0 // pred_check
    _
  $region7: #{graphsage_forward.2} parent=0 // pred_check_branch
    %12 = sbr.rel (0) target = $region9
  $region8: #{graphsage_forward.2} parent=0 // pred_region
    _
  $region9: #{graphsage_forward.2} parent=0 // pred_fallthru
    _
  // Predicated region
  $region10: #{graphsage_forward.2} parent=0 // pred_check
    _
  $region11: #{graphsage_forward.2} parent=0 // pred_check_branch
    %14 = sbr.rel (0) target = $region13
  $region12: #{graphsage_forward.2} parent=0 // pred_region
    _
  $region13: #{graphsage_forward.2} parent=0 // pred_fallthru
    _
  // Predicated region
  $region14: #{graphsage_forward.2} parent=0 // pred_check
    _
  $region15: #{graphsage_forward.2} parent=0 // pred_check_branch
    %16 = sbr.rel (0) target = $region17
  $region16: #{graphsage_forward.2} parent=0 // pred_region
    _
  $region17: #{graphsage_forward.2} parent=0 // pred_fallthru
    _
  %v18 = vld [vmem:[%s0] sm:$0xff]
  %v19 = vld [vmem:[%s0 + $0x8] sm:$0xff]
  %v20 = vld [vmem:[%s0 + $0x10] sm:$0xff]
  %v21 = vld [vmem:[%s0 + $0x18] sm:$0xff]
  %v22 = vunpack.c.l.s8.bf16 %v18
  %v23 = vunpack.c.h.s8.bf16 %v18
  %v24 = vunpack.c.l.s8.bf16 %v19
  %v25 = vunpack.c.h.s8.bf16 %v19
  %v26 = vunpack.c.l.s8.bf16 %v20
  %v27 = vunpack.c.h.s8.bf16 %v20
  %v28 = vunpack.c.l.s8.bf16 %v21
  %v29 = vunpack.c.h.s8.bf16 %v21
  %v30 = vld [vmem:[%s1] sm:$0xf]
  %v31 = vld [vmem:[%s1 + $0x4] sm:$0xf]
  %v32 = vld [vmem:[%s1 + $0x8] sm:$0xf]
  %v33 = vld [vmem:[%s1 + $0xc] sm:$0xf]
  %v34 = vld [vmem:[%s1 + $0x10] sm:$0xf]
  %v35 = vld [vmem:[%s1 + $0x14] sm:$0xf]
  %v36 = vld [vmem:[%s1 + $0x18] sm:$0xf]
  %v37 = vld [vmem:[%s1 + $0x1c] sm:$0xf]
  %v38 = vld [vmem:[%s1 + $0x20] sm:$0xf]
  %v39 = vld [vmem:[%s1 + $0x24] sm:$0xf]
  %v40 = vld [vmem:[%s1 + $0x28] sm:$0xf]
  %v41 = vld [vmem:[%s1 + $0x2c] sm:$0xf]
  %v42 = vld [vmem:[%s1 + $0x30] sm:$0xf]
  %v43 = vld [vmem:[%s1 + $0x34] sm:$0xf]
  %v44 = vld [vmem:[%s1 + $0x38] sm:$0xf]
  %v45 = vld [vmem:[%s1 + $0x3c] sm:$0xf]
  %v62 = vunpack.c.l.b16 %v30
  %v63 = vunpack.c.l.b16 %v31
  %v64 = vunpack.c.l.b16 %v32
  %v65 = vunpack.c.l.b16 %v33
  %v66 = vunpack.c.l.b16 %v34
  %v67 = vunpack.c.l.b16 %v35
  %v68 = vunpack.c.l.b16 %v36
  %v69 = vunpack.c.l.b16 %v37
  %v70 = vunpack.c.l.b16 %v38
  %v71 = vunpack.c.l.b16 %v39
  %v72 = vunpack.c.l.b16 %v40
  %v73 = vunpack.c.l.b16 %v41
  %v74 = vunpack.c.l.b16 %v42
  %v75 = vunpack.c.l.b16 %v43
  %v76 = vunpack.c.l.b16 %v44
  %v77 = vunpack.c.l.b16 %v45
  %v78 = vpack.c.b16 %v63, %v62
  %v79 = vpack.c.b16 %v65, %v64
  %v80 = vpack.c.b16 %v67, %v66
  %v81 = vpack.c.b16 %v69, %v68
  %v82 = vpack.c.b16 %v71, %v70
  %v83 = vpack.c.b16 %v73, %v72
  %v84 = vpack.c.b16 %v75, %v74
  %v85 = vpack.c.b16 %v77, %v76
  %94 = vmatprep.subr.bf16.mxu0 0
  %95 = vmatpush1.bf16.msra.mxu0 %v78
  %96 = vmatprep.subr.bf16.mxu0 0
  %97 = vmatpush1.bf16.msra.mxu0 %v79
  %98 = vmatprep.subr.bf16.mxu0 0
  %99 = vmatpush1.bf16.msra.mxu0 %v80
  %100 = vmatprep.subr.bf16.mxu0 0
  %101 = vmatpush1.bf16.msra.mxu0 %v81
  %102 = vmatprep.subr.bf16.mxu0 0
  %103 = vmatpush1.bf16.msra.mxu0 %v82
  %104 = vmatprep.subr.bf16.mxu0 0
  %105 = vmatpush1.bf16.msra.mxu0 %v83
  %106 = vmatprep.subr.bf16.mxu0 0
  %107 = vmatpush1.bf16.msra.mxu0 %v84
  %108 = vmatprep.subr.bf16.mxu0 0
  %109 = vmatpush1.bf16.msra.mxu0 %v85
  %110 = vmatprep.subr.bf16.mxu0 0
  %111 = vmatpush1.bf16.msra.mxu0 0
  %112 = vmatprep.subr.bf16.mxu0 0
  %113 = vmatpush1.bf16.msra.mxu0 0
  %114 = vmatprep.subr.bf16.mxu0 0
  %115 = vmatpush1.bf16.msra.mxu0 0
  %116 = vmatprep.subr.bf16.mxu0 0
  %117 = vmatpush1.bf16.msra.mxu0 0
  %118 = vmatprep.subr.bf16.mxu0 0
  %119 = vmatpush1.bf16.msra.mxu0 0
  %120 = vmatprep.subr.bf16.mxu0 0
  %121 = vmatpush1.bf16.msra.mxu0 0
  %122 = vmatprep.subr.bf16.mxu0 0
  %123 = vmatpush1.bf16.msra.mxu0 0
  %124 = vmatprep.subr.bf16.mxu0 0
  %125 = vmatpush1.bf16.msra.mxu0 0
  %126 = vmatprep.mubr.bf16.mxu0 0
  %127 = vmatmul.mubr.bf16.gmra.mrb[0].mxu0 %v22
  %v128 = vpop.f32.mrb[0].mxu0
  %v129 = vadd.f32 0.0, %v128
  %v130 = vpop.f32.mrb[0].mxu0
  %v131 = vpop.f32.mrb[0].mxu0
  %v132 = vadd.f32 0.0, %v131
  %v133 = vpop.f32.mrb[0].mxu0
  %134 = vmatprep.mubr.bf16.mxu0 0
  %135 = vmatmul.mubr.bf16.gmra.mrb[0].mxu0 %v23
  %v136 = vpop.f32.mrb[0].mxu0
  %v137 = vadd.f32 0.0, %v136
  %v138 = vpop.f32.mrb[0].mxu0
  %v139 = vpop.f32.mrb[0].mxu0
  %v140 = vadd.f32 0.0, %v139
  %v141 = vpop.f32.mrb[0].mxu0
  %142 = vmatprep.mubr.bf16.mxu0 0
  %143 = vmatmul.mubr.bf16.gmra.mrb[0].mxu0 %v24
  %v144 = vpop.f32.mrb[0].mxu0
  %v145 = vadd.f32 0.0, %v144
  %v146 = vpop.f32.mrb[0].mxu0
  %v147 = vpop.f32.mrb[0].mxu0
  %v148 = vadd.f32 0.0, %v147
  %v149 = vpop.f32.mrb[0].mxu0
  %150 = vmatprep.mubr.bf16.mxu0 0
  %151 = vmatmul.mubr.bf16.gmra.mrb[0].mxu0 %v25
  %v152 = vpop.f32.mrb[0].mxu0
  %v153 = vadd.f32 0.0, %v152
  %v154 = vpop.f32.mrb[0].mxu0
  %v155 = vpop.f32.mrb[0].mxu0
  %v156 = vadd.f32 0.0, %v155
  %v157 = vpop.f32.mrb[0].mxu0
  %158 = vmatprep.mubr.bf16.mxu0 0
  %159 = vmatmul.mubr.bf16.gmra.mrb[0].mxu0 %v26
  %v160 = vpop.f32.mrb[0].mxu0
  %v161 = vadd.f32 0.0, %v160
  %v162 = vpop.f32.mrb[0].mxu0
  %v163 = vpop.f32.mrb[0].mxu0
  %v164 = vadd.f32 0.0, %v163
  %v165 = vpop.f32.mrb[0].mxu0
  %166 = vmatprep.mubr.bf16.mxu0 0
  %167 = vmatmul.mubr.bf16.gmra.mrb[0].mxu0 %v27
  %v168 = vpop.f32.mrb[0].mxu0
  %v169 = vadd.f32 0.0, %v168
  %v170 = vpop.f32.mrb[0].mxu0
  %v171 = vpop.f32.mrb[0].mxu0
  %v172 = vadd.f32 0.0, %v171
  %v173 = vpop.f32.mrb[0].mxu0
  %174 = vmatprep.mubr.bf16.mxu0 0
  %175 = vmatmul.mubr.bf16.gmra.mrb[0].mxu0 %v28
  %v176 = vpop.f32.mrb[0].mxu0
  %v177 = vadd.f32 0.0, %v176
  %v178 = vpop.f32.mrb[0].mxu0
  %v179 = vpop.f32.mrb[0].mxu0
  %v180 = vadd.f32 0.0, %v179
  %v181 = vpop.f32.mrb[0].mxu0
  %182 = vmatprep.mubr.bf16.mxu0 0
  %183 = vmatmul.mubr.bf16.gmra.mrb[0].mxu0 %v29
  %v184 = vpop.f32.mrb[0].mxu0
  %v185 = vadd.f32 0.0, %v184
  %v186 = vpop.f32.mrb[0].mxu0
  %v187 = vpop.f32.mrb[0].mxu0
  %v188 = vadd.f32 0.0, %v187
  %v189 = vpop.f32.mrb[0].mxu0
  %190 = vdwg.mxu0
  %v191 = vld [vmem:[%s3] sm:$0xff]
  %v192 = vld [vmem:[%s3 + $0x8] sm:$0xff]
  %v193 = vld [vmem:[%s3 + $0x10] sm:$0xff]
  %v194 = vld [vmem:[%s3 + $0x18] sm:$0xff]
  %v195 = vld [vmem:[%s3 + $0x20] sm:$0xff]
  %v196 = vld [vmem:[%s3 + $0x28] sm:$0xff]
  %v197 = vld [vmem:[%s3 + $0x30] sm:$0xff]
  %v198 = vld [vmem:[%s3 + $0x38] sm:$0xff]
  %v199 = vld [vmem:[%s3 + $0x40] sm:$0xff]
  %v200 = vld [vmem:[%s3 + $0x48] sm:$0xff]
  %v201 = vld [vmem:[%s3 + $0x50] sm:$0xff]
  %v202 = vld [vmem:[%s3 + $0x58] sm:$0xff]
  %v203 = vld [vmem:[%s3 + $0x60] sm:$0xff]
  %v204 = vld [vmem:[%s3 + $0x68] sm:$0xff]
  %v205 = vld [vmem:[%s3 + $0x70] sm:$0xff]
  %v206 = vld [vmem:[%s3 + $0x78] sm:$0xff]
  %208 = vset.pattern.permute.xlu0 0
  %209 = vperm.xlu0 %208, %v191
  %v210 = vpop.permute.xlu0 %209
  %213 = vset.pattern.permute.xlu0 0
  %214 = vperm.xlu0 %213, %v192
  %v215 = vpop.permute.xlu0 %214
  %218 = vset.pattern.permute.xlu0 0
  %219 = vperm.xlu0 %218, %v193
  %v220 = vpop.permute.xlu0 %219
  %223 = vset.pattern.permute.xlu0 0
  %224 = vperm.xlu0 %223, %v194
  %v225 = vpop.permute.xlu0 %224
  %228 = vset.pattern.permute.xlu0 0
  %229 = vperm.xlu0 %228, %v195
  %v230 = vpop.permute.xlu0 %229
  %233 = vset.pattern.permute.xlu0 0
  %234 = vperm.xlu0 %233, %v196
  %v235 = vpop.permute.xlu0 %234
  %238 = vset.pattern.permute.xlu0 0
  %239 = vperm.xlu0 %238, %v197
  %v240 = vpop.permute.xlu0 %239
  %243 = vset.pattern.permute.xlu0 0
  %244 = vperm.xlu0 %243, %v198
  %v245 = vpop.permute.xlu0 %244
  %248 = vset.pattern.permute.xlu0 0
  %249 = vperm.xlu0 %248, %v199
  %v250 = vpop.permute.xlu0 %249
  %253 = vset.pattern.permute.xlu0 0
  %254 = vperm.xlu0 %253, %v200
  %v255 = vpop.permute.xlu0 %254
  %258 = vset.pattern.permute.xlu0 0
  %259 = vperm.xlu0 %258, %v201
  %v260 = vpop.permute.xlu0 %259
  %263 = vset.pattern.permute.xlu0 0
  %264 = vperm.xlu0 %263, %v202
  %v265 = vpop.permute.xlu0 %264
  %268 = vset.pattern.permute.xlu0 0
  %269 = vperm.xlu0 %268, %v203
  %v270 = vpop.permute.xlu0 %269
  %273 = vset.pattern.permute.xlu0 0
  %274 = vperm.xlu0 %273, %v204
  %v275 = vpop.permute.xlu0 %274
  %278 = vset.pattern.permute.xlu0 0
  %279 = vperm.xlu0 %278, %v205
  %v280 = vpop.permute.xlu0 %279
  %283 = vset.pattern.permute.xlu0 0
  %284 = vperm.xlu0 %283, %v206
  %v285 = vpop.permute.xlu0 %284
  %v287 = vmul.f32 %v129, %v210
  %v288 = vmul.f32 %v132, %v215
  %v289 = vmul.f32 %v137, %v220
  %v290 = vmul.f32 %v140, %v225
  %v291 = vmul.f32 %v145, %v230
  %v292 = vmul.f32 %v148, %v235
  %v293 = vmul.f32 %v153, %v240
  %v294 = vmul.f32 %v156, %v245
  %v295 = vmul.f32 %v161, %v250
  %v296 = vmul.f32 %v164, %v255
  %v297 = vmul.f32 %v169, %v260
  %v298 = vmul.f32 %v172, %v265
  %v299 = vmul.f32 %v177, %v270
  %v300 = vmul.f32 %v180, %v275
  %v301 = vmul.f32 %v185, %v280
  %v302 = vmul.f32 %v188, %v285
  %v303 = vld [vmem:[%s2] sm:$0xff]
  %v304 = vld [vmem:[%s2 + $0x8] sm:$0xff]
  %v305 = vld [vmem:[%s2 + $0x10] sm:$0xff]
  %v306 = vld [vmem:[%s2 + $0x18] sm:$0xff]
  %v307 = vld [vmem:[%s2 + $0x20] sm:$0xff]
  %v308 = vld [vmem:[%s2 + $0x28] sm:$0xff]
  %v309 = vld [vmem:[%s2 + $0x30] sm:$0xff]
  %v310 = vld [vmem:[%s2 + $0x38] sm:$0xff]
  %v311 = vld [vmem:[%s2 + $0x40] sm:$0xff]
  %v312 = vld [vmem:[%s2 + $0x48] sm:$0xff]
  %v313 = vld [vmem:[%s2 + $0x50] sm:$0xff]
  %v314 = vld [vmem:[%s2 + $0x58] sm:$0xff]
  %v315 = vld [vmem:[%s2 + $0x60] sm:$0xff]
  %v316 = vld [vmem:[%s2 + $0x68] sm:$0xff]
  %v317 = vld [vmem:[%s2 + $0x70] sm:$0xff]
  %v318 = vld [vmem:[%s2 + $0x78] sm:$0xff]
  %v319 = vadd.f32 %v287, %v303
  %v320 = vadd.f32 %v288, %v304
  %v321 = vadd.f32 %v289, %v305
  %v322 = vadd.f32 %v290, %v306
  %v323 = vadd.f32 %v291, %v307
  %v324 = vadd.f32 %v292, %v308
  %v325 = vadd.f32 %v293, %v309
  %v326 = vadd.f32 %v294, %v310
  %v327 = vadd.f32 %v295, %v311
  %v328 = vadd.f32 %v296, %v312
  %v329 = vadd.f32 %v297, %v313
  %v330 = vadd.f32 %v298, %v314
  %v331 = vadd.f32 %v299, %v315
  %v332 = vadd.f32 %v300, %v316
  %v333 = vadd.f32 %v301, %v317
  %v334 = vadd.f32 %v302, %v318
  %v335 = vmax.f32 %v319, 0.0
  %v336 = vmax.f32 %v320, 0.0
  %v337 = vmax.f32 %v321, 0.0
  %v338 = vmax.f32 %v322, 0.0
  %v339 = vmax.f32 %v323, 0.0
  %v340 = vmax.f32 %v324, 0.0
  %v341 = vmax.f32 %v325, 0.0
  %v342 = vmax.f32 %v326, 0.0
  %v343 = vmax.f32 %v327, 0.0
  %v344 = vmax.f32 %v328, 0.0
  %v345 = vmax.f32 %v329, 0.0
  %v346 = vmax.f32 %v330, 0.0
  %v347 = vmax.f32 %v331, 0.0
  %v348 = vmax.f32 %v332, 0.0
  %v349 = vmax.f32 %v333, 0.0
  %v350 = vmax.f32 %v334, 0.0
  %v351 = vpack.c.bf16 %v336, %v335
  %v352 = vpack.c.bf16 %v338, %v337
  %v353 = vpack.c.bf16 %v340, %v339
  %v354 = vpack.c.bf16 %v342, %v341
  %v355 = vpack.c.bf16 %v344, %v343
  %v356 = vpack.c.bf16 %v346, %v345
  %v357 = vpack.c.bf16 %v348, %v347
  %v358 = vpack.c.bf16 %v350, %v349
  %359 = vst [vmem:[%s4] sm:$0xff] %v351
  %360 = vst [vmem:[%s4 + $0x8] sm:$0xff] %v352
  %361 = vst [vmem:[%s4 + $0x10] sm:$0xff] %v353
  %362 = vst [vmem:[%s4 + $0x18] sm:$0xff] %v354
  %363 = vst [vmem:[%s4 + $0x20] sm:$0xff] %v355
  %364 = vst [vmem:[%s4 + $0x28] sm:$0xff] %v356
  %365 = vst [vmem:[%s4 + $0x30] sm:$0xff] %v357
  %366 = vst [vmem:[%s4 + $0x38] sm:$0xff] %v358
  // Predicated region
  $region18: #{graphsage_forward.2} parent=0 // pred_check
    _
  $region19: #{graphsage_forward.2} parent=0 // pred_check_branch
    %368 = sbr.rel (0) target = $region21
  $region20: #{graphsage_forward.2} parent=0 // pred_region
    _
  $region21: #{graphsage_forward.2} parent=0 // pred_fallthru
    _
  // Predicated region
  $region22: #{graphsage_forward.2} parent=0 // pred_check
    _
  $region23: #{graphsage_forward.2} parent=0 // pred_check_branch
    %370 = sbr.rel (0) target = $region25
  $region24: #{graphsage_forward.2} parent=0 // pred_region
    _
  $region25: #{graphsage_forward.2} parent=0 // pred_fallthru
    _

// kernel: graphsage_forward.3
$region0: #{graphsage_forward.3}
  #allocation0 [shape = 'u32[]', space=smem, size = 0x4, offset = 0x4, fixed_abs, tag = 'smem constant byte address 0x4 - core index']
  #allocation1 [shape = 'u32[144,128]{1,0:T(1,128)}', space=vmem, size = 0x12000, scoped, tag = 'internal scratch']
  %s0 = inlined_call_operand.vmem [shape: s8[128,128], index: 0, kind: input, shape index: {}]
  %s1 = inlined_call_operand.vmem [shape: bf16[128,128], index: 1, kind: input, shape index: {}]
  %s2 = inlined_call_operand.vmem [shape: f32[128,128], index: 2, kind: input, shape index: {}]
  %s3 = inlined_call_operand.vmem [shape: f32[128,1], index: 3, kind: input, shape index: {}]
  %s4 = inlined_call_operand.vmem [shape: f32[128,128], index: 4, kind: output, shape index: {}]
  %s5 = sld [smem:[#allocation0]]
  $region26: #{graphsage_forward.3} parent=0
    _
  %s7 = ssub.s32 1, %s5
  %s8 = scalar_select 0, %s7, %s5
  // Predicated region
  $region2: #{graphsage_forward.3} parent=0 // pred_check
    _
  $region3: #{graphsage_forward.3} parent=0 // pred_check_branch
    %10 = sbr.rel (0) target = $region5
  $region4: #{graphsage_forward.3} parent=0 // pred_region
    _
  $region5: #{graphsage_forward.3} parent=0 // pred_fallthru
    _
  // Predicated region
  $region6: #{graphsage_forward.3} parent=0 // pred_check
    _
  $region7: #{graphsage_forward.3} parent=0 // pred_check_branch
    %12 = sbr.rel (0) target = $region9
  $region8: #{graphsage_forward.3} parent=0 // pred_region
    _
  $region9: #{graphsage_forward.3} parent=0 // pred_fallthru
    _
  // Predicated region
  $region10: #{graphsage_forward.3} parent=0 // pred_check
    _
  $region11: #{graphsage_forward.3} parent=0 // pred_check_branch
    %14 = sbr.rel (0) target = $region13
  $region12: #{graphsage_forward.3} parent=0 // pred_region
    _
  $region13: #{graphsage_forward.3} parent=0 // pred_fallthru
    _
  // Predicated region
  $region14: #{graphsage_forward.3} parent=0 // pred_check
    _
  $region15: #{graphsage_forward.3} parent=0 // pred_check_branch
    %16 = sbr.rel (0) target = $region17
  $region16: #{graphsage_forward.3} parent=0 // pred_region
    _
  $region17: #{graphsage_forward.3} parent=0 // pred_fallthru
    _
  %v18 = vld [vmem:[%s0] sm:$0xff]
  %v19 = vld [vmem:[%s0 + $0x8] sm:$0xff]
  %v20 = vld [vmem:[%s0 + $0x10] sm:$0xff]
  %v21 = vld [vmem:[%s0 + $0x18] sm:$0xff]
  %v22 = vunpack.c.l.s8.bf16 %v18
  %v23 = vunpack.c.h.s8.bf16 %v18
  %v24 = vunpack.c.l.s8.bf16 %v19
  %v25 = vunpack.c.h.s8.bf16 %v19
  %v26 = vunpack.c.l.s8.bf16 %v20
  %v27 = vunpack.c.h.s8.bf16 %v20
  %v28 = vunpack.c.l.s8.bf16 %v21
  %v29 = vunpack.c.h.s8.bf16 %v21
  %v30 = vld [vmem:[%s1] sm:$0xf]
  %v31 = vld [vmem:[%s1 + $0x4] sm:$0xf]
  %v32 = vld [vmem:[%s1 + $0x8] sm:$0xf]
  %v33 = vld [vmem:[%s1 + $0xc] sm:$0xf]
  %v34 = vld [vmem:[%s1 + $0x10] sm:$0xf]
  %v35 = vld [vmem:[%s1 + $0x14] sm:$0xf]
  %v36 = vld [vmem:[%s1 + $0x18] sm:$0xf]
  %v37 = vld [vmem:[%s1 + $0x1c] sm:$0xf]
  %v38 = vld [vmem:[%s1 + $0x20] sm:$0xf]
  %v39 = vld [vmem:[%s1 + $0x24] sm:$0xf]
  %v40 = vld [vmem:[%s1 + $0x28] sm:$0xf]
  %v41 = vld [vmem:[%s1 + $0x2c] sm:$0xf]
  %v42 = vld [vmem:[%s1 + $0x30] sm:$0xf]
  %v43 = vld [vmem:[%s1 + $0x34] sm:$0xf]
  %v44 = vld [vmem:[%s1 + $0x38] sm:$0xf]
  %v45 = vld [vmem:[%s1 + $0x3c] sm:$0xf]
  %v62 = vunpack.c.l.b16 %v30
  %v63 = vunpack.c.l.b16 %v31
  %v64 = vunpack.c.l.b16 %v32
  %v65 = vunpack.c.l.b16 %v33
  %v66 = vunpack.c.l.b16 %v34
  %v67 = vunpack.c.l.b16 %v35
  %v68 = vunpack.c.l.b16 %v36
  %v69 = vunpack.c.l.b16 %v37
  %v70 = vunpack.c.l.b16 %v38
  %v71 = vunpack.c.l.b16 %v39
  %v72 = vunpack.c.l.b16 %v40
  %v73 = vunpack.c.l.b16 %v41
  %v74 = vunpack.c.l.b16 %v42
  %v75 = vunpack.c.l.b16 %v43
  %v76 = vunpack.c.l.b16 %v44
  %v77 = vunpack.c.l.b16 %v45
  %v78 = vpack.c.b16 %v63, %v62
  %v79 = vpack.c.b16 %v65, %v64
  %v80 = vpack.c.b16 %v67, %v66
  %v81 = vpack.c.b16 %v69, %v68
  %v82 = vpack.c.b16 %v71, %v70
  %v83 = vpack.c.b16 %v73, %v72
  %v84 = vpack.c.b16 %v75, %v74
  %v85 = vpack.c.b16 %v77, %v76
  %94 = vmatprep.subr.bf16.mxu0 0
  %95 = vmatpush1.bf16.msra.mxu0 %v78
  %96 = vmatprep.subr.bf16.mxu0 0
  %97 = vmatpush1.bf16.msra.mxu0 %v79
  %98 = vmatprep.subr.bf16.mxu0 0
  %99 = vmatpush1.bf16.msra.mxu0 %v80
  %100 = vmatprep.subr.bf16.mxu0 0
  %101 = vmatpush1.bf16.msra.mxu0 %v81
  %102 = vmatprep.subr.bf16.mxu0 0
  %103 = vmatpush1.bf16.msra.mxu0 %v82
  %104 = vmatprep.subr.bf16.mxu0 0
  %105 = vmatpush1.bf16.msra.mxu0 %v83
  %106 = vmatprep.subr.bf16.mxu0 0
  %107 = vmatpush1.bf16.msra.mxu0 %v84
  %108 = vmatprep.subr.bf16.mxu0 0
  %109 = vmatpush1.bf16.msra.mxu0 %v85
  %110 = vmatprep.subr.bf16.mxu0 0
  %111 = vmatpush1.bf16.msra.mxu0 0
  %112 = vmatprep.subr.bf16.mxu0 0
  %113 = vmatpush1.bf16.msra.mxu0 0
  %114 = vmatprep.subr.bf16.mxu0 0
  %115 = vmatpush1.bf16.msra.mxu0 0
  %116 = vmatprep.subr.bf16.mxu0 0
  %117 = vmatpush1.bf16.msra.mxu0 0
  %118 = vmatprep.subr.bf16.mxu0 0
  %119 = vmatpush1.bf16.msra.mxu0 0
  %120 = vmatprep.subr.bf16.mxu0 0
  %121 = vmatpush1.bf16.msra.mxu0 0
  %122 = vmatprep.subr.bf16.mxu0 0
  %123 = vmatpush1.bf16.msra.mxu0 0
  %124 = vmatprep.subr.bf16.mxu0 0
  %125 = vmatpush1.bf16.msra.mxu0 0
  %126 = vmatprep.mubr.bf16.mxu0 0
  %127 = vmatmul.mubr.bf16.gmra.mrb[0].mxu0 %v22
  %v128 = vpop.f32.mrb[0].mxu0
  %v129 = vadd.f32 0.0, %v128
  %v130 = vpop.f32.mrb[0].mxu0
  %v131 = vpop.f32.mrb[0].mxu0
  %v132 = vadd.f32 0.0, %v131
  %v133 = vpop.f32.mrb[0].mxu0
  %134 = vmatprep.mubr.bf16.mxu0 0
  %135 = vmatmul.mubr.bf16.gmra.mrb[0].mxu0 %v23
  %v136 = vpop.f32.mrb[0].mxu0
  %v137 = vadd.f32 0.0, %v136
  %v138 = vpop.f32.mrb[0].mxu0
  %v139 = vpop.f32.mrb[0].mxu0
  %v140 = vadd.f32 0.0, %v139
  %v141 = vpop.f32.mrb[0].mxu0
  %142 = vmatprep.mubr.bf16.mxu0 0
  %143 = vmatmul.mubr.bf16.gmra.mrb[0].mxu0 %v24
  %v144 = vpop.f32.mrb[0].mxu0
  %v145 = vadd.f32 0.0, %v144
  %v146 = vpop.f32.mrb[0].mxu0
  %v147 = vpop.f32.mrb[0].mxu0
  %v148 = vadd.f32 0.0, %v147
  %v149 = vpop.f32.mrb[0].mxu0
  %150 = vmatprep.mubr.bf16.mxu0 0
  %151 = vmatmul.mubr.bf16.gmra.mrb[0].mxu0 %v25
  %v152 = vpop.f32.mrb[0].mxu0
  %v153 = vadd.f32 0.0, %v152
  %v154 = vpop.f32.mrb[0].mxu0
  %v155 = vpop.f32.mrb[0].mxu0
  %v156 = vadd.f32 0.0, %v155
  %v157 = vpop.f32.mrb[0].mxu0
  %158 = vmatprep.mubr.bf16.mxu0 0
  %159 = vmatmul.mubr.bf16.gmra.mrb[0].mxu0 %v26
  %v160 = vpop.f32.mrb[0].mxu0
  %v161 = vadd.f32 0.0, %v160
  %v162 = vpop.f32.mrb[0].mxu0
  %v163 = vpop.f32.mrb[0].mxu0
  %v164 = vadd.f32 0.0, %v163
  %v165 = vpop.f32.mrb[0].mxu0
  %166 = vmatprep.mubr.bf16.mxu0 0
  %167 = vmatmul.mubr.bf16.gmra.mrb[0].mxu0 %v27
  %v168 = vpop.f32.mrb[0].mxu0
  %v169 = vadd.f32 0.0, %v168
  %v170 = vpop.f32.mrb[0].mxu0
  %v171 = vpop.f32.mrb[0].mxu0
  %v172 = vadd.f32 0.0, %v171
  %v173 = vpop.f32.mrb[0].mxu0
  %174 = vmatprep.mubr.bf16.mxu0 0
  %175 = vmatmul.mubr.bf16.gmra.mrb[0].mxu0 %v28
  %v176 = vpop.f32.mrb[0].mxu0
  %v177 = vadd.f32 0.0, %v176
  %v178 = vpop.f32.mrb[0].mxu0
  %v179 = vpop.f32.mrb[0].mxu0
  %v180 = vadd.f32 0.0, %v179
  %v181 = vpop.f32.mrb[0].mxu0
  %182 = vmatprep.mubr.bf16.mxu0 0
  %183 = vmatmul.mubr.bf16.gmra.mrb[0].mxu0 %v29
  %v184 = vpop.f32.mrb[0].mxu0
  %v185 = vadd.f32 0.0, %v184
  %v186 = vpop.f32.mrb[0].mxu0
  %v187 = vpop.f32.mrb[0].mxu0
  %v188 = vadd.f32 0.0, %v187
  %v189 = vpop.f32.mrb[0].mxu0
  %190 = vdwg.mxu0
  %v191 = vld [vmem:[%s3] sm:$0xff]
  %v192 = vld [vmem:[%s3 + $0x8] sm:$0xff]
  %v193 = vld [vmem:[%s3 + $0x10] sm:$0xff]
  %v194 = vld [vmem:[%s3 + $0x18] sm:$0xff]
  %v195 = vld [vmem:[%s3 + $0x20] sm:$0xff]
  %v196 = vld [vmem:[%s3 + $0x28] sm:$0xff]
  %v197 = vld [vmem:[%s3 + $0x30] sm:$0xff]
  %v198 = vld [vmem:[%s3 + $0x38] sm:$0xff]
  %v199 = vld [vmem:[%s3 + $0x40] sm:$0xff]
  %v200 = vld [vmem:[%s3 + $0x48] sm:$0xff]
  %v201 = vld [vmem:[%s3 + $0x50] sm:$0xff]
  %v202 = vld [vmem:[%s3 + $0x58] sm:$0xff]
  %v203 = vld [vmem:[%s3 + $0x60] sm:$0xff]
  %v204 = vld [vmem:[%s3 + $0x68] sm:$0xff]
  %v205 = vld [vmem:[%s3 + $0x70] sm:$0xff]
  %v206 = vld [vmem:[%s3 + $0x78] sm:$0xff]
  %208 = vset.pattern.permute.xlu0 0
  %209 = vperm.xlu0 %208, %v191
  %v210 = vpop.permute.xlu0 %209
  %213 = vset.pattern.permute.xlu0 0
  %214 = vperm.xlu0 %213, %v192
  %v215 = vpop.permute.xlu0 %214
  %218 = vset.pattern.permute.xlu0 0
  %219 = vperm.xlu0 %218, %v193
  %v220 = vpop.permute.xlu0 %219
  %223 = vset.pattern.permute.xlu0 0
  %224 = vperm.xlu0 %223, %v194
  %v225 = vpop.permute.xlu0 %224
  %228 = vset.pattern.permute.xlu0 0
  %229 = vperm.xlu0 %228, %v195
  %v230 = vpop.permute.xlu0 %229
  %233 = vset.pattern.permute.xlu0 0
  %234 = vperm.xlu0 %233, %v196
  %v235 = vpop.permute.xlu0 %234
  %238 = vset.pattern.permute.xlu0 0
  %239 = vperm.xlu0 %238, %v197
  %v240 = vpop.permute.xlu0 %239
  %243 = vset.pattern.permute.xlu0 0
  %244 = vperm.xlu0 %243, %v198
  %v245 = vpop.permute.xlu0 %244
  %248 = vset.pattern.permute.xlu0 0
  %249 = vperm.xlu0 %248, %v199
  %v250 = vpop.permute.xlu0 %249
  %253 = vset.pattern.permute.xlu0 0
  %254 = vperm.xlu0 %253, %v200
  %v255 = vpop.permute.xlu0 %254
  %258 = vset.pattern.permute.xlu0 0
  %259 = vperm.xlu0 %258, %v201
  %v260 = vpop.permute.xlu0 %259
  %263 = vset.pattern.permute.xlu0 0
  %264 = vperm.xlu0 %263, %v202
  %v265 = vpop.permute.xlu0 %264
  %268 = vset.pattern.permute.xlu0 0
  %269 = vperm.xlu0 %268, %v203
  %v270 = vpop.permute.xlu0 %269
  %273 = vset.pattern.permute.xlu0 0
  %274 = vperm.xlu0 %273, %v204
  %v275 = vpop.permute.xlu0 %274
  %278 = vset.pattern.permute.xlu0 0
  %279 = vperm.xlu0 %278, %v205
  %v280 = vpop.permute.xlu0 %279
  %283 = vset.pattern.permute.xlu0 0
  %284 = vperm.xlu0 %283, %v206
  %v285 = vpop.permute.xlu0 %284
  %v287 = vmul.f32 %v129, %v210
  %v288 = vmul.f32 %v132, %v215
  %v289 = vmul.f32 %v137, %v220
  %v290 = vmul.f32 %v140, %v225
  %v291 = vmul.f32 %v145, %v230
  %v292 = vmul.f32 %v148, %v235
  %v293 = vmul.f32 %v153, %v240
  %v294 = vmul.f32 %v156, %v245
  %v295 = vmul.f32 %v161, %v250
  %v296 = vmul.f32 %v164, %v255
  %v297 = vmul.f32 %v169, %v260
  %v298 = vmul.f32 %v172, %v265
  %v299 = vmul.f32 %v177, %v270
  %v300 = vmul.f32 %v180, %v275
  %v301 = vmul.f32 %v185, %v280
  %v302 = vmul.f32 %v188, %v285
  %v303 = vld [vmem:[%s2] sm:$0xff]
  %v304 = vld [vmem:[%s2 + $0x8] sm:$0xff]
  %v305 = vld [vmem:[%s2 + $0x10] sm:$0xff]
  %v306 = vld [vmem:[%s2 + $0x18] sm:$0xff]
  %v307 = vld [vmem:[%s2 + $0x20] sm:$0xff]
  %v308 = vld [vmem:[%s2 + $0x28] sm:$0xff]
  %v309 = vld [vmem:[%s2 + $0x30] sm:$0xff]
  %v310 = vld [vmem:[%s2 + $0x38] sm:$0xff]
  %v311 = vld [vmem:[%s2 + $0x40] sm:$0xff]
  %v312 = vld [vmem:[%s2 + $0x48] sm:$0xff]
  %v313 = vld [vmem:[%s2 + $0x50] sm:$0xff]
  %v314 = vld [vmem:[%s2 + $0x58] sm:$0xff]
  %v315 = vld [vmem:[%s2 + $0x60] sm:$0xff]
  %v316 = vld [vmem:[%s2 + $0x68] sm:$0xff]
  %v317 = vld [vmem:[%s2 + $0x70] sm:$0xff]
  %v318 = vld [vmem:[%s2 + $0x78] sm:$0xff]
  %v319 = vadd.f32 %v287, %v303
  %v320 = vadd.f32 %v288, %v304
  %v321 = vadd.f32 %v289, %v305
  %v322 = vadd.f32 %v290, %v306
  %v323 = vadd.f32 %v291, %v307
  %v324 = vadd.f32 %v292, %v308
  %v325 = vadd.f32 %v293, %v309
  %v326 = vadd.f32 %v294, %v310
  %v327 = vadd.f32 %v295, %v311
  %v328 = vadd.f32 %v296, %v312
  %v329 = vadd.f32 %v297, %v313
  %v330 = vadd.f32 %v298, %v314
  %v331 = vadd.f32 %v299, %v315
  %v332 = vadd.f32 %v300, %v316
  %v333 = vadd.f32 %v301, %v317
  %v334 = vadd.f32 %v302, %v318
  %335 = vst [vmem:[%s4] sm:$0xff] %v319
  %336 = vst [vmem:[%s4 + $0x8] sm:$0xff] %v320
  %337 = vst [vmem:[%s4 + $0x10] sm:$0xff] %v321
  %338 = vst [vmem:[%s4 + $0x18] sm:$0xff] %v322
  %339 = vst [vmem:[%s4 + $0x20] sm:$0xff] %v323
  %340 = vst [vmem:[%s4 + $0x28] sm:$0xff] %v324
  %341 = vst [vmem:[%s4 + $0x30] sm:$0xff] %v325
  %342 = vst [vmem:[%s4 + $0x38] sm:$0xff] %v326
  %343 = vst [vmem:[%s4 + $0x40] sm:$0xff] %v327
  %344 = vst [vmem:[%s4 + $0x48] sm:$0xff] %v328
  %345 = vst [vmem:[%s4 + $0x50] sm:$0xff] %v329
  %346 = vst [vmem:[%s4 + $0x58] sm:$0xff] %v330
  %347 = vst [vmem:[%s4 + $0x60] sm:$0xff] %v331
  %348 = vst [vmem:[%s4 + $0x68] sm:$0xff] %v332
  %349 = vst [vmem:[%s4 + $0x70] sm:$0xff] %v333
  %350 = vst [vmem:[%s4 + $0x78] sm:$0xff] %v334
  // Predicated region
  $region18: #{graphsage_forward.3} parent=0 // pred_check
    _
  $region19: #{graphsage_forward.3} parent=0 // pred_check_branch
    %352 = sbr.rel (0) target = $region21
  $region20: #{graphsage_forward.3} parent=0 // pred_region
    _
  $region21: #{graphsage_forward.3} parent=0 // pred_fallthru
    _
  // Predicated region
  $region22: #{graphsage_forward.3} parent=0 // pred_check
    _
  $region23: #{graphsage_forward.3} parent=0 // pred_check_branch
    %354 = sbr.rel (0) target = $region25
  $region24: #{graphsage_forward.3} parent=0 // pred_region
    _
  $region25: #{graphsage_forward.3} parent=0 // pred_fallthru
    _

</llo_original>
